<compile_context>
chip_gen: v7x
topology: tpu7x:2x2x1
jax: 0.10.0
libtpu: 0.0.40
codegen_flags: <defaults>
</compile_context>

<pallas_src>
import jax
import jax.numpy as jnp
from jax import lax
from jax.experimental import pallas as pl
from jax.experimental.pallas import tpu as pltpu


def _round_up(x, m):
    return ((x + m - 1) // m) * m


# ----------------------------------------------------------------------------
# Kernel 1: conv as one matmul per block + per-channel partial sums for BN.
# ----------------------------------------------------------------------------
def _conv_kernel(p_ref, w_ref, y_ref, s_ref):
    # p_ref : (1, KCp, thw)    bf16  im2col'ed input slab (patch^T, lane-dense)
    # w_ref : (tco, KCp)       bf16  conv weight block (resident across b sweep)
    # y_ref : (1, tco, thw)    bf16  conv output, channels-major, lane-dense
    # s_ref : (1, 1, 2, tco)   f32   [sum, sum of squares] over this block's pixels
    acc = jnp.dot(w_ref[...], p_ref[0],
                  preferred_element_type=jnp.float32)            # (tco, thw) f32
    y_ref[0] = acc.astype(y_ref.dtype)
    s_ref[...] = jnp.stack(
        [jnp.sum(acc, axis=1), jnp.sum(acc * acc, axis=1)], axis=0)[None, None]


# ----------------------------------------------------------------------------
# Kernel 2: BatchNorm application (lane-dense elementwise scale/shift).
# ----------------------------------------------------------------------------
def _bn_kernel(y_ref, scale_ref, shift_ref, o_ref):
    # y_ref : (1, tco, thw) bf16,  scale/shift : (tco, 1) f32 broadcast on lanes
    y = y_ref[0].astype(jnp.float32)
    o_ref[0] = (y * scale_ref[...] + shift_ref[...]).astype(o_ref.dtype)


# ----------------------------------------------------------------------------
# Wrapper: layout plumbing (im2col, weight reshape), stats fold, two passes.
# ----------------------------------------------------------------------------
def conv_bn_2d(x_nchw, weight_oihw, gamma, beta, eps=1e-5, out_dtype=None):
    N, Cin, H, W = x_nchw.shape
    Cout, _, K, _ = weight_oihw.shape
    pad = (K - 1) // 2
    out_dtype = x_nchw.dtype if out_dtype is None else out_dtype
    # TODO(synk): only stride=1 (the module's default) is implemented.

    HW = H * W
    KC = K * K * Cin
    KCp = _round_up(KC, 16)                  # bf16 sublane quantum, not 128

    # Cout blocking: bounds the weight tile and adds parallel grid steps (v7x).
    if Cout > 256 and Cout % 256 == 0:
        tco = 256
    else:
        tco = Cout
    nco = Cout // tco

    # Spatial tile: target 512 lanes, shrink (in 128 steps) to fit a ~40 MiB
    # conv-pass working set (safe within v7x's 64 MiB physical VMEM).
    thw = min(512, _round_up(HW, 128))
    budget = 40 << 20
    def _ws(t):
        return 2 * (KCp * t * 2) + 2 * (tco * KCp * 2) + 2 * (tco * t * 2)
    while thw > 128 and _ws(thw) > budget:
        thw -= 128
    HWp = _round_up(HW, thw)                 # pad HW up to a multiple of the tile
    nblk = HWp // thw

    # ---- wrapper-side im2col, channels-major directly from NCHW (bf16) ----
    xb = x_nchw.astype(jnp.bfloat16)
    xp = jnp.pad(xb, ((0, 0), (0, 0), (pad, pad), (pad, pad)))
    taps = [xp[:, :, kh:kh + H, kw:kw + W].reshape(N, Cin, HW)
            for kh in range(K) for kw in range(K)]
    patches = jnp.concatenate(taps, axis=1)                        # (N, KC, HW)
    patches = jnp.pad(patches, ((0, 0), (0, KCp - KC), (0, HWp - HW)))

    # Weight: OIHW -> (Cout, K*K*Cin) with (kh, kw, cin) ordering, cin fastest,
    # matching the tap concatenation order above.
    wt = jnp.transpose(weight_oihw, (0, 2, 3, 1)).reshape(Cout, KC)
    wt = jnp.pad(wt, ((0, 0), (0, KCp - KC))).astype(jnp.bfloat16)

    cparams = pltpu.CompilerParams(
        dimension_semantics=("parallel", "parallel", "parallel"),
        vmem_limit_bytes=48 * 1024 * 1024)

    # ---- pass 1: conv matmul + per-block channel sums ----
    # Grid order (N, nblk, nco): the (large) patch tile stays resident across
    # the inner Cout sweep; only the (small) weight block is re-fetched.
    y, sums = pl.pallas_call(
        _conv_kernel,
        out_shape=(jax.ShapeDtypeStruct((N, Cout, HWp), jnp.bfloat16),
                   jax.ShapeDtypeStruct((N, nblk, 2, Cout), jnp.float32)),
        grid=(N, nblk, nco),
        in_specs=[
            pl.BlockSpec((1, KCp, thw), lambda n, b, c: (n, 0, b)),
            pl.BlockSpec((tco, KCp), lambda n, b, c: (c, 0)),
        ],
        out_specs=(
            pl.BlockSpec((1, tco, thw), lambda n, b, c: (n, c, b)),
            pl.BlockSpec((1, 1, 2, tco), lambda n, b, c: (n, b, 0, c)),
        ),
        compiler_params=cparams,
    )(patches, wt)

    # ---- tiny glue: fold per-block partial sums into batch statistics ----
    # (padded lanes are all-zero patches -> contribute 0 to both sums)
    count = N * HW
    s = jnp.sum(sums[:, :, 0, :], axis=(0, 1))
    sq = jnp.sum(sums[:, :, 1, :], axis=(0, 1))
    mean = s / count
    var = jnp.maximum(sq / count - mean * mean, 0.0)   # biased var, as PyTorch BN
    scale = gamma.astype(jnp.float32) / jnp.sqrt(var + eps)
    shift = beta.astype(jnp.float32) - mean * scale
    # TODO(synk): running_mean/running_var buffer updates are training-side state
    # mutations and do not affect the forward output; not reproduced here.

    # ---- pass 2: BN apply (pure elementwise, lane-dense, bf16 read) ----
    out = pl.pallas_call(
        _bn_kernel,
        out_shape=jax.ShapeDtypeStruct((N, Cout, HWp), out_dtype),
        grid=(N, nblk, nco),
        in_specs=[
            pl.BlockSpec((1, tco, thw), lambda n, b, c: (n, c, b)),
            pl.BlockSpec((tco, 1), lambda n, b, c: (c, 0)),
            pl.BlockSpec((tco, 1), lambda n, b, c: (c, 0)),
        ],
        out_specs=pl.BlockSpec((1, tco, thw), lambda n, b, c: (n, c, b)),
        compiler_params=cparams,
    )(y, scale.reshape(Cout, 1), shift.reshape(Cout, 1))

    # Channels-major layout was produced directly: slice off lane padding,
    # then a plain reshape (no transpose).
    return out[:, :, :HW].reshape(N, Cout, H, W)


# ----------------------------------------------------------------------------
# Pure-JAX reference (correctness check only)
# ----------------------------------------------------------------------------
def _reference(x, weight, gamma, beta, eps=1e-5):
    y = lax.conv_general_dilated(
        x, weight, window_strides=(1, 1), padding=((1, 1), (1, 1)),
        dimension_numbers=("NCHW", "OIHW", "NCHW"))
    mean = jnp.mean(y, axis=(0, 2, 3), keepdims=True)
    var = jnp.mean((y - mean) ** 2, axis=(0, 2, 3), keepdims=True)
    g = gamma.reshape(1, -1, 1, 1)
    b = beta.reshape(1, -1, 1, 1)
    return (y - mean) / jnp.sqrt(var + eps) * g + b


if __name__ == "__main__":
    key = jax.random.PRNGKey(0)
    k1, k2, k3, k4 = jax.random.split(key, 4)

    # Primary small shape consistent with the module.
    N, Cin, Cout, H, W, K = 2, 4, 8, 16, 16, 3
    x = jax.random.normal(k1, (N, Cin, H, W), jnp.float32)
    weight = jax.random.normal(k2, (Cout, Cin, K, K), jnp.float32) * 0.1
    gamma = jnp.ones((Cout,), jnp.float32)     # BatchNorm2d default affine init
    beta = jnp.zeros((Cout,), jnp.float32)

    fn = jax.jit(conv_bn_2d)
    out = jax.block_until_ready(fn(x, weight, gamma, beta))
    ref = _reference(x, weight, gamma, beta)
    assert out.shape == ref.shape == (N, Cout, H, W)
    # bf16 matmul operands + bf16 intermediate -> looser tolerance than pure f32.
    max_err = float(jnp.max(jnp.abs(out - ref)))
    assert jnp.allclose(out, ref, atol=5e-2, rtol=5e-2), max_err

    # Secondary tiny shape exercising the lane-padding path (HW % 128 != 0).
    N2, Cin2, Cout2, H2, W2 = 1, 3, 8, 10, 10
    x2 = jax.random.normal(k3, (N2, Cin2, H2, W2), jnp.float32)
    w2 = jax.random.normal(k4, (Cout2, Cin2, K, K), jnp.float32) * 0.1
    g2 = jnp.ones((Cout2,), jnp.float32)
    b2 = jnp.zeros((Cout2,), jnp.float32)
    out2 = jax.block_until_ready(jax.jit(conv_bn_2d)(x2, w2, g2, b2))
    ref2 = _reference(x2, w2, g2, b2)
    max_err2 = float(jnp.max(jnp.abs(out2 - ref2)))
    assert out2.shape == ref2.shape == (N2, Cout2, H2, W2)
    assert jnp.allclose(out2, ref2, atol=5e-2, rtol=5e-2), max_err2

    print("KERNEL_OK")
</pallas_src>

<mosaic_0001>
module attributes {stable_mosaic.version = 11 : i64} {
  func.func @_conv_kernel(%arg0: i32, %arg1: i32, %arg2: i32, %arg3: memref<1x48x256xbf16, #tpu.memory_space<vmem>>, %arg4: memref<8x48xbf16, #tpu.memory_space<vmem>>, %arg5: memref<1x8x256xbf16, #tpu.memory_space<vmem>>, %arg6: memref<1x1x2x8xf32, #tpu.memory_space<vmem>>) attributes {dimension_semantics = [#tpu.dimension_semantics<parallel>, #tpu.dimension_semantics<parallel>, #tpu.dimension_semantics<parallel>], iteration_bounds = array<i64: 2, 1, 1>, scalar_prefetch = 0 : i64, scratch_operands = 0 : i64, tpu.core_type = #tpu.core_type<tc>, window_params = [{transform_indices = @transform_0, window_bounds = array<i64: 1, 48, 256>}, {transform_indices = @transform_1, window_bounds = array<i64: 8, 48>}, {transform_indices = @transform_2, window_bounds = array<i64: 1, 8, 256>}, {transform_indices = @transform_3, window_bounds = array<i64: 1, 1, 2, 8>}]} {
    %c0 = arith.constant 0 : index
    %c0_0 = arith.constant 0 : index
    %0 = vector.load %arg4[%c0, %c0_0] : memref<8x48xbf16, #tpu.memory_space<vmem>>, vector<8x48xbf16>
    %c0_1 = arith.constant 0 : index
    %c0_2 = arith.constant 0 : index
    %c0_3 = arith.constant 0 : index
    %1 = vector.load %arg3[%c0_1, %c0_2, %c0_3] : memref<1x48x256xbf16, #tpu.memory_space<vmem>>, vector<1x48x256xbf16>
    %2 = vector.shape_cast %1 : vector<1x48x256xbf16> to vector<48x256xbf16>
    %cst = arith.constant dense<0.000000e+00> : vector<8x256xf32>
    %3 = tpu.matmul %0, %2, %cst {dimension_numbers = #tpu.dot_dimension_numbers<[1], [0], [0], [1], [0, 0, 1, 1], [], []>} : vector<8x48xbf16>, vector<48x256xbf16>, vector<8x256xf32> -> vector<8x256xf32>
    %4 = arith.truncf %3 : vector<8x256xf32> to vector<8x256xbf16>
    %c0_4 = arith.constant 0 : index
    %c0_5 = arith.constant 0 : index
    %c0_6 = arith.constant 0 : index
    %5 = vector.load %arg5[%c0_4, %c0_5, %c0_6] : memref<1x8x256xbf16, #tpu.memory_space<vmem>>, vector<1x8x256xbf16>
    %6 = vector.shape_cast %5 : vector<1x8x256xbf16> to vector<8x256xbf16>
    %7 = vector.shape_cast %4 : vector<8x256xbf16> to vector<1x8x256xbf16>
    tpu.vector_store %arg5[%c0_4, %c0_5, %c0_6], %7 {strides = array<i32>} : memref<1x8x256xbf16, #tpu.memory_space<vmem>>, vector<1x8x256xbf16>,
    %cst_7 = arith.constant dense<0.000000e+00> : vector<8xf32>
    %8 = vector.multi_reduction <add>, %3, %cst_7 [1] : vector<8x256xf32> to vector<8xf32>
    %9 = arith.mulf %3, %3 : vector<8x256xf32>
    %cst_8 = arith.constant dense<0.000000e+00> : vector<8xf32>
    %10 = vector.multi_reduction <add>, %9, %cst_8 [1] : vector<8x256xf32> to vector<8xf32>
    %11 = vector.shape_cast %8 : vector<8xf32> to vector<1x8xf32>
    %12 = vector.shape_cast %10 : vector<8xf32> to vector<1x8xf32>
    %13 = tpu.concatenate %11, %12 in 0 : vector<1x8xf32>, vector<1x8xf32> -> vector<2x8xf32>
    %14 = vector.shape_cast %13 : vector<2x8xf32> to vector<1x1x2x8xf32>
    %c0_9 = arith.constant 0 : index
    %c0_10 = arith.constant 0 : index
    %c0_11 = arith.constant 0 : index
    %c0_12 = arith.constant 0 : index
    %15 = vector.load %arg6[%c0_9, %c0_10, %c0_11, %c0_12] : memref<1x1x2x8xf32, #tpu.memory_space<vmem>>, vector<1x1x2x8xf32>
    tpu.vector_store %arg6[%c0_9, %c0_10, %c0_11, %c0_12], %14 {strides = array<i32>} : memref<1x1x2x8xf32, #tpu.memory_space<vmem>>, vector<1x1x2x8xf32>,
    return
  }
  func.func @transform_0(%arg0: i32, %arg1: i32, %arg2: i32) -> (i32, i32, i32) {
    %c0_i32 = arith.constant 0 : i32
    %c0_i32_0 = arith.constant 0 : i32
    return %arg0, %c0_i32, %arg1 : i32, i32, i32
  }
  func.func @transform_1(%arg0: i32, %arg1: i32, %arg2: i32) -> (i32, i32) {
    %c0_i32 = arith.constant 0 : i32
    %c0_i32_0 = arith.constant 0 : i32
    return %arg2, %c0_i32 : i32, i32
  }
  func.func @transform_2(%arg0: i32, %arg1: i32, %arg2: i32) -> (i32, i32, i32) {
    %c0_i32 = arith.constant 0 : i32
    return %arg0, %arg2, %arg1 : i32, i32, i32
  }
  func.func @transform_3(%arg0: i32, %arg1: i32, %arg2: i32) -> (i32, i32, i32, i32) {
    %c0_i32 = arith.constant 0 : i32
    %c0_i32_0 = arith.constant 0 : i32
    return %arg0, %arg1, %c0_i32, %arg2 : i32, i32, i32, i32
  }
}

module attributes {stable_mosaic.version = 11 : i64} {
  func.func @_bn_kernel(%arg0: i32, %arg1: i32, %arg2: i32, %arg3: memref<1x8x256xbf16, #tpu.memory_space<vmem>>, %arg4: memref<8x1xf32, #tpu.memory_space<vmem>>, %arg5: memref<8x1xf32, #tpu.memory_space<vmem>>, %arg6: memref<1x8x256xf32, #tpu.memory_space<vmem>>) attributes {dimension_semantics = [#tpu.dimension_semantics<parallel>, #tpu.dimension_semantics<parallel>, #tpu.dimension_semantics<parallel>], iteration_bounds = array<i64: 2, 1, 1>, scalar_prefetch = 0 : i64, scratch_operands = 0 : i64, tpu.core_type = #tpu.core_type<tc>, window_params = [{transform_indices = @transform_0, window_bounds = array<i64: 1, 8, 256>}, {transform_indices = @transform_1, window_bounds = array<i64: 8, 1>}, {transform_indices = @transform_2, window_bounds = array<i64: 8, 1>}, {transform_indices = @transform_3, window_bounds = array<i64: 1, 8, 256>}]} {
    %c0 = arith.constant 0 : index
    %c0_0 = arith.constant 0 : index
    %c0_1 = arith.constant 0 : index
    %0 = vector.load %arg3[%c0, %c0_0, %c0_1] : memref<1x8x256xbf16, #tpu.memory_space<vmem>>, vector<1x8x256xbf16>
    %1 = vector.shape_cast %0 : vector<1x8x256xbf16> to vector<8x256xbf16>
    %2 = arith.extf %1 : vector<8x256xbf16> to vector<8x256xf32>
    %c0_2 = arith.constant 0 : index
    %c0_3 = arith.constant 0 : index
    %3 = vector.load %arg4[%c0_2, %c0_3] : memref<8x1xf32, #tpu.memory_space<vmem>>, vector<8x1xf32>
    %4 = vector.broadcast %3 : vector<8x1xf32> to vector<8x256xf32>
    %5 = arith.mulf %2, %4 : vector<8x256xf32>
    %c0_4 = arith.constant 0 : index
    %c0_5 = arith.constant 0 : index
    %6 = vector.load %arg5[%c0_4, %c0_5] : memref<8x1xf32, #tpu.memory_space<vmem>>, vector<8x1xf32>
    %7 = vector.broadcast %6 : vector<8x1xf32> to vector<8x256xf32>
    %8 = arith.addf %5, %7 : vector<8x256xf32>
    %c0_6 = arith.constant 0 : index
    %c0_7 = arith.constant 0 : index
    %c0_8 = arith.constant 0 : index
    %9 = vector.load %arg6[%c0_6, %c0_7, %c0_8] : memref<1x8x256xf32, #tpu.memory_space<vmem>>, vector<1x8x256xf32>
    %10 = vector.shape_cast %9 : vector<1x8x256xf32> to vector<8x256xf32>
    %11 = vector.shape_cast %8 : vector<8x256xf32> to vector<1x8x256xf32>
    tpu.vector_store %arg6[%c0_6, %c0_7, %c0_8], %11 {strides = array<i32>} : memref<1x8x256xf32, #tpu.memory_space<vmem>>, vector<1x8x256xf32>,
    return
  }
  func.func @transform_0(%arg0: i32, %arg1: i32, %arg2: i32) -> (i32, i32, i32) {
    %c0_i32 = arith.constant 0 : i32
    return %arg0, %arg2, %arg1 : i32, i32, i32
  }
  func.func @transform_1(%arg0: i32, %arg1: i32, %arg2: i32) -> (i32, i32) {
    %c0_i32 = arith.constant 0 : i32
    %c0_i32_0 = arith.constant 0 : i32
    return %arg2, %c0_i32 : i32, i32
  }
  func.func @transform_2(%arg0: i32, %arg1: i32, %arg2: i32) -> (i32, i32) {
    %c0_i32 = arith.constant 0 : i32
    %c0_i32_0 = arith.constant 0 : i32
    return %arg2, %c0_i32 : i32, i32
  }
  func.func @transform_3(%arg0: i32, %arg1: i32, %arg2: i32) -> (i32, i32, i32) {
    %c0_i32 = arith.constant 0 : i32
    return %arg0, %arg2, %arg1 : i32, i32, i32
  }
}

</mosaic_0001>

<llo_original>
// kernel: conv_bn_2d.3
$region0: #{conv_bn_2d.3}
  #allocation0 [shape = 'u32[]', space=smem, size = 0x4, offset = 0x4, fixed_abs, tag = 'smem constant byte address 0x4 - core index']
  #allocation1 [shape = 'u32[144,128]{1,0:T(1,128)}', space=vmem, size = 0x12000, scoped, tag = 'internal scratch']
  %s0 = inlined_call_operand.vmem [shape: bf16[2,8,256], index: 0, kind: input, shape index: {}]
  %s1 = inlined_call_operand.vmem [shape: f32[8,1], index: 1, kind: input, shape index: {}]
  %s2 = inlined_call_operand.vmem [shape: f32[8,1], index: 2, kind: input, shape index: {}]
  %s3 = inlined_call_operand.vmem [shape: f32[2,8,256], index: 3, kind: output, shape index: {}]
  %s4 = sld [smem:[#allocation0]]
  $region45: #{conv_bn_2d.3} parent=0
    _
  %s6 = ssub.s32 1, %s4
  %s7 = scalar_select 0, %s6, %s4
  loop: start=0, step=1, limit=4
  $region2: #{conv_bn_2d.3} parent=0 // loop_pre_header
    _
  $region3: #{conv_bn_2d.3} parent=0 // loop_header
    %s9 = sphi 0, %s13
    %p10 = scmp.ge.s32.totalorder %s9, 4
    %s16 = sphi 0, %s35
    %s17 = sphi 0, %s31
    %s18 = sphi 0, %s27
    %s19 = sphi 0, %s16
    %s20 = sphi 0, %s17
    %s21 = sphi 0, %s18
    %s22 = sphi 0, %s19
    %s23 = sphi 0, %s20
    %s24 = sphi 0, %s21
    %s42 = sphi 0, %s44
    %s45 = sphi 0, %s42
    %s46 = sphi 0, %s45
    %s62 = sphi 0, %s46
    %s68 = sphi 0, %s70
    %s71 = sphi 0, %s68
    %s72 = sphi 0, %s71
    %s88 = sphi 0, %s72
    %s94 = sphi 0, %s96
    %s97 = sphi 0, %s94
    %s98 = sphi 0, %s97
    %s114 = sphi 0, %s98
    %s124 = sphi 0, %s126
    %s127 = sphi 0, %s124
    %s128 = sphi 0, %s127
    %s144 = sphi 0, %s128
  $region4: #{conv_bn_2d.3} parent=0 // loop_header_branch
    %12 = sbr.rel (%p10) target = $region8
  $region5: #{conv_bn_2d.3} parent=0 // loop_body
    %s14 = ssub.s32 %s9, 1
    %s15 = ssub.s32 %s9, 2
    %s25 = sadd.s32 1, %s18
    %p26 = scmp.ge.s32.totalorder %s25, 1
    %s27 = scalar_select %p26, 0, %s25
    %s28 = sadd.s32 1, %s17
    %s29 = scalar_select %p26, %s28, %s17
    %p30 = scmp.ge.s32.totalorder %s29, 1
    %s31 = scalar_select %p30, 0, %s29
    %s32 = sadd.s32 1, %s16
    %s33 = scalar_select %p30, %s32, %s16
    %p34 = scmp.ge.s32.totalorder %s33, 2
    %s35 = scalar_select %p34, 0, %s33
    %s36 = ssub.s32 %s16, %s35
    %s37 = ssub.s32 %s18, %s27
    %s38 = sor.u32 %s36, %s37
    %s39 = ssub.s32 %s17, %s31
    %s40 = sor.u32 %s38, %s39
    %p41 = scmp.eq.s32.totalorder %s40, 0
    %s43 = sadd.s32 %s42, 1
    %s44 = scalar_select %p41, %s42, %s43
    %p47 = pneg %p41
    %p48 = scmp.eq.s32.totalorder %s9, 1
    %p49 = por %p47, %p48
    %p50 = scmp.ne.s32.totalorder %s42, %s45
    %p51 = scmp.eq.s32.totalorder %s9, 0
    %p52 = por %p50, %p51
    %p53 = scmp.ne.s32.totalorder %s42, %s45
    %p54 = scmp.eq.s32.totalorder %s14, 1
    %p55 = por %p53, %p54
    %p56 = scmp.ne.s32.totalorder %s45, %s46
    %p57 = scmp.eq.s32.totalorder %s14, 0
    %p58 = por %p56, %p57
    %p59 = scmp.ne.s32.totalorder %s45, %s46
    %p60 = scmp.eq.s32.totalorder %s15, 1
    %p61 = por %p59, %p60
    %p63 = scmp.ne.s32.totalorder %s46, %s62
    %p64 = scmp.eq.s32.totalorder %s15, 0
    %p65 = por %p63, %p64
    %s66 = ssub.s32 %s18, %s27
    %p67 = scmp.eq.s32.totalorder %s66, 0
    %s69 = sadd.s32 %s68, 1
    %s70 = scalar_select %p67, %s68, %s69
    %p73 = pneg %p67
    %p74 = scmp.eq.s32.totalorder %s9, 1
    %p75 = por %p73, %p74
    %p76 = scmp.ne.s32.totalorder %s68, %s71
    %p77 = scmp.eq.s32.totalorder %s9, 0
    %p78 = por %p76, %p77
    %p79 = scmp.ne.s32.totalorder %s68, %s71
    %p80 = scmp.eq.s32.totalorder %s14, 1
    %p81 = por %p79, %p80
    %p82 = scmp.ne.s32.totalorder %s71, %s72
    %p83 = scmp.eq.s32.totalorder %s14, 0
    %p84 = por %p82, %p83
    %p85 = scmp.ne.s32.totalorder %s71, %s72
    %p86 = scmp.eq.s32.totalorder %s15, 1
    %p87 = por %p85, %p86
    %p89 = scmp.ne.s32.totalorder %s72, %s88
    %p90 = scmp.eq.s32.totalorder %s15, 0
    %p91 = por %p89, %p90
    %s92 = ssub.s32 %s18, %s27
    %p93 = scmp.eq.s32.totalorder %s92, 0
    %s95 = sadd.s32 %s94, 1
    %s96 = scalar_select %p93, %s94, %s95
    %p99 = pneg %p93
    %p100 = scmp.eq.s32.totalorder %s9, 1
    %p101 = por %p99, %p100
    %p102 = scmp.ne.s32.totalorder %s94, %s97
    %p103 = scmp.eq.s32.totalorder %s9, 0
    %p104 = por %p102, %p103
    %p105 = scmp.ne.s32.totalorder %s94, %s97
    %p106 = scmp.eq.s32.totalorder %s14, 1
    %p107 = por %p105, %p106
    %p108 = scmp.ne.s32.totalorder %s97, %s98
    %p109 = scmp.eq.s32.totalorder %s14, 0
    %p110 = por %p108, %p109
    %p111 = scmp.ne.s32.totalorder %s97, %s98
    %p112 = scmp.eq.s32.totalorder %s15, 1
    %p113 = por %p111, %p112
    %p115 = scmp.ne.s32.totalorder %s98, %s114
    %p116 = scmp.eq.s32.totalorder %s15, 0
    %p117 = por %p115, %p116
    %s118 = ssub.s32 %s16, %s35
    %s119 = ssub.s32 %s18, %s27
    %s120 = sor.u32 %s118, %s119
    %s121 = ssub.s32 %s17, %s31
    %s122 = sor.u32 %s120, %s121
    %p123 = scmp.eq.s32.totalorder %s122, 0
    %s125 = sadd.s32 %s124, 1
    %s126 = scalar_select %p123, %s124, %s125
    %p129 = pneg %p123
    %p130 = scmp.eq.s32.totalorder %s9, 1
    %p131 = por %p129, %p130
    %p132 = scmp.ne.s32.totalorder %s124, %s127
    %p133 = scmp.eq.s32.totalorder %s9, 0
    %p134 = por %p132, %p133
    %p135 = scmp.ne.s32.totalorder %s124, %s127
    %p136 = scmp.eq.s32.totalorder %s14, 1
    %p137 = por %p135, %p136
    %p138 = scmp.ne.s32.totalorder %s127, %s128
    %p139 = scmp.eq.s32.totalorder %s14, 0
    %p140 = por %p138, %p139
    %p141 = scmp.ne.s32.totalorder %s127, %s128
    %p142 = scmp.eq.s32.totalorder %s15, 1
    %p143 = por %p141, %p142
    %p145 = scmp.ne.s32.totalorder %s128, %s144
    %p146 = scmp.eq.s32.totalorder %s15, 0
    %p147 = por %p145, %p146
    %p148 = scmp.le.s32.totalorder 1, %s9
    %p149 = scmp.lt.s32.totalorder %s9, 3
    %p150 = pnand %p148, %p149
    %p151 = pneg %p150
    // Predicated region
    $region9: #{conv_bn_2d.3} parent=5 // pred_check
      _
    $region10: #{conv_bn_2d.3} parent=5 // pred_check_branch
      %153 = sbr.rel (%p150) target = $region12
    $region11: #{conv_bn_2d.3} parent=5 // pred_region
      %s154 = ssub.s32 %s9, 1
      // Predicated region
      $region13: #{conv_bn_2d.3} parent=11 // pred_check
        %p155 = pneg %p84
      $region14: #{conv_bn_2d.3} parent=11 // pred_check_branch
        %157 = sbr.rel (%p155) target = $region16
      $region15: #{conv_bn_2d.3} parent=11 // pred_region
        %p158 = scmp.lt.s32.totalorder %s21, 0
        %s159 = scalar_select %p158, %s21, 0
        %s160 = smul.addr %s159, 8
        %s161 = scalar_lea.vmem %s1, %s160
      $region16: #{conv_bn_2d.3} parent=11 // pred_fallthru
        _
      // Predicated region
      $region17: #{conv_bn_2d.3} parent=11 // pred_check
        %p162 = pneg %p110
      $region18: #{conv_bn_2d.3} parent=11 // pred_check_branch
        %164 = sbr.rel (%p162) target = $region20
      $region19: #{conv_bn_2d.3} parent=11 // pred_region
        %p165 = scmp.lt.s32.totalorder %s21, 0
        %s166 = scalar_select %p165, %s21, 0
        %s167 = smul.addr %s166, 8
        %s168 = scalar_lea.vmem %s2, %s167
      $region20: #{conv_bn_2d.3} parent=11 // pred_fallthru
        _
    $region12: #{conv_bn_2d.3} parent=5 // pred_fallthru
      _
    %p169 = scmp.lt.s32.totalorder %s9, 2
    // Predicated region
    $region21: #{conv_bn_2d.3} parent=5 // pred_check
      %p170 = pneg %p169
    $region22: #{conv_bn_2d.3} parent=5 // pred_check_branch
      %172 = sbr.rel (%p170) target = $region24
    $region23: #{conv_bn_2d.3} parent=5 // pred_region
      // Predicated region
      $region25: #{conv_bn_2d.3} parent=23 // pred_check
        %p173 = pneg %p52
      $region26: #{conv_bn_2d.3} parent=23 // pred_check_branch
        %175 = sbr.rel (%p173) target = $region28
      $region27: #{conv_bn_2d.3} parent=23 // pred_region
        %s176 = smul.u32 2, %s17
        %p177 = scmp.lt.s32.totalorder %s16, 1
        %s178 = scalar_select %p177, %s16, 1
        %p179 = scmp.lt.s32.totalorder %s18, 0
        %s180 = scalar_select %p179, %s18, 0
        %p181 = scmp.lt.s32.totalorder %s176, 1
        %s182 = scalar_select %p181, %s176, 1
        %s183 = smul.addr %s180, 2
        %s184 = sadd.s32 %s182, %s183
        %s185 = smul.addr %s178, 2
        %s186 = sadd.s32 %s184, %s185
        %s187 = smul.addr %s186, 4
        %s188 = scalar_lea.vmem %s0, %s187
        %s189 = smul.u32 2, %s17
      $region28: #{conv_bn_2d.3} parent=23 // pred_fallthru
        _
    $region24: #{conv_bn_2d.3} parent=5 // pred_fallthru
      _
    %p190 = scmp.le.s32.totalorder 1, %s9
    %p191 = scmp.lt.s32.totalorder %s9, 3
    %p192 = pnand %p190, %p191
    %p193 = pneg %p192
    // Predicated region
    $region29: #{conv_bn_2d.3} parent=5 // pred_check
      _
    $region30: #{conv_bn_2d.3} parent=5 // pred_check_branch
      %195 = sbr.rel (%p192) target = $region32
    $region31: #{conv_bn_2d.3} parent=5 // pred_region
      %s196 = ssub.s32 %s9, 1
      %s197 = smul.u32 2, %s20
      %p198 = scmp.lt.s32.totalorder %s19, 1
      %s199 = scalar_select %p198, %s19, 1
      %p200 = scmp.lt.s32.totalorder %s21, 0
      %s201 = scalar_select %p200, %s21, 0
      %p202 = scmp.lt.s32.totalorder %s197, 1
      %s203 = scalar_select %p202, %s197, 1
      %s204 = smul.addr %s201, 2
      %s205 = sadd.s32 %s203, %s204
      %s206 = smul.addr %s199, 2
      %s207 = sadd.s32 %s205, %s206
      %s208 = smul.addr %s207, 4
      %s209 = scalar_lea.vmem %s0, %s208
      %p210 = pneg %p58
      %p211 = pneg %p55
      %p212 = scmp.lt.s32.totalorder %s21, 0
      %s213 = scalar_select %p212, %s21, 0
      %s214 = smul.addr %s213, 8
      %s215 = scalar_lea.vmem %s1, %s214
      %p216 = pneg %p84
      %p217 = pneg %p81
      %p218 = scmp.lt.s32.totalorder %s21, 0
      %s219 = scalar_select %p218, %s21, 0
      %s220 = smul.addr %s219, 8
      %s221 = scalar_lea.vmem %s2, %s220
      %p222 = pneg %p110
      %p223 = pneg %p107
      %p224 = pneg %p140
      %p225 = pneg %p137
      %s226 = smul.u32 2, %s20
      %p227 = scmp.lt.s32.totalorder %s19, 1
      %s228 = scalar_select %p227, %s19, 1
      %p229 = scmp.lt.s32.totalorder %s21, 0
      %s230 = scalar_select %p229, %s21, 0
      %p231 = scmp.lt.s32.totalorder %s226, 1
      %s232 = scalar_select %p231, %s226, 1
      %s233 = smul.addr %s230, 2
      %s234 = sadd.s32 %s232, %s233
      %s235 = smul.addr %s228, 2
      %s236 = sadd.s32 %s234, %s235
      %s237 = smul.addr %s236, 8
      %s238 = scalar_lea.vmem %s3, %s237
      %s239 = smul.u32 2, %s20
      %p240 = scmp.lt.s32.totalorder %s19, 1
      %s241 = scalar_select %p240, %s19, 1
      %p242 = scmp.lt.s32.totalorder %s21, 0
      %s243 = scalar_select %p242, %s21, 0
      %p244 = scmp.lt.s32.totalorder %s239, 1
      %s245 = scalar_select %p244, %s239, 1
      %s246 = smul.addr %s243, 2
      %s247 = sadd.s32 %s245, %s246
      %s248 = smul.addr %s241, 2
      %s249 = sadd.s32 %s247, %s248
      %s250 = smul.addr %s249, 4
      %s251 = scalar_lea.vmem %s0, %s250
      %s252 = smul.u32 2, %s20
      %p253 = scmp.lt.s32.totalorder %s21, 0
      %s254 = scalar_select %p253, %s21, 0
      %s255 = smul.addr %s254, 8
      %s256 = scalar_lea.vmem %s1, %s255
      %p257 = scmp.lt.s32.totalorder %s21, 0
      %s258 = scalar_select %p257, %s21, 0
      %s259 = smul.addr %s258, 8
      %s260 = scalar_lea.vmem %s2, %s259
      %s261 = smul.u32 2, %s20
      %p262 = scmp.lt.s32.totalorder %s19, 1
      %s263 = scalar_select %p262, %s19, 1
      %p264 = scmp.lt.s32.totalorder %s21, 0
      %s265 = scalar_select %p264, %s21, 0
      %p266 = scmp.lt.s32.totalorder %s261, 1
      %s267 = scalar_select %p266, %s261, 1
      %s268 = smul.addr %s265, 2
      %s269 = sadd.s32 %s267, %s268
      %s270 = smul.addr %s263, 2
      %s271 = sadd.s32 %s269, %s270
      %s272 = smul.addr %s271, 8
      %s273 = scalar_lea.vmem %s3, %s272
      %s274 = smul.u32 2, %s20
      %v275 = vld [vmem:[%s251] sm:$0xff]
      %v276 = vunpack.c.l.bf16 %v275
      %v277 = vunpack.c.h.bf16 %v275
      %v278 = vld [vmem:[%s256] sm:$0xff]
      %280 = vset.pattern.permute.xlu0 0
      %281 = vperm.xlu0 %280, %v278
      %v282 = vpop.permute.xlu0 %281
      %v284 = vmul.f32 %v276, %v282
      %v285 = vmul.f32 %v277, %v282
      %v286 = vld [vmem:[%s260] sm:$0xff]
      %288 = vset.pattern.permute.xlu0 0
      %289 = vperm.xlu0 %288, %v286
      %v290 = vpop.permute.xlu0 %289
      %v292 = vadd.f32 %v284, %v290
      %v293 = vadd.f32 %v285, %v290
      %294 = vst [vmem:[%s273] sm:$0xff] %v292
      %295 = vst [vmem:[%s273 + $0x8] sm:$0xff] %v293
      %s296 = smul.u32 2, %s20
      %p297 = scmp.lt.s32.totalorder %s19, 1
      %s298 = scalar_select %p297, %s19, 1
      %p299 = scmp.lt.s32.totalorder %s21, 0
      %s300 = scalar_select %p299, %s21, 0
      %p301 = scmp.lt.s32.totalorder %s296, 1
      %s302 = scalar_select %p301, %s296, 1
      %s303 = smul.addr %s300, 2
      %s304 = sadd.s32 %s302, %s303
      %s305 = smul.addr %s298, 2
      %s306 = sadd.s32 %s304, %s305
      %s307 = smul.addr %s306, 8
      %s308 = scalar_lea.vmem %s3, %s307
      // Predicated region
      $region33: #{conv_bn_2d.3} parent=31 // pred_check
        %p309 = pneg %p137
      $region34: #{conv_bn_2d.3} parent=31 // pred_check_branch
        %311 = sbr.rel (%p309) target = $region36
      $region35: #{conv_bn_2d.3} parent=31 // pred_region
        %s312 = smul.u32 2, %s20
      $region36: #{conv_bn_2d.3} parent=31 // pred_fallthru
        _
    $region32: #{conv_bn_2d.3} parent=5 // pred_fallthru
      _
    %p313 = scmp.le.s32.totalorder 2, %s9
    // Predicated region
    $region37: #{conv_bn_2d.3} parent=5 // pred_check
      %p314 = pneg %p313
    $region38: #{conv_bn_2d.3} parent=5 // pred_check_branch
      %316 = sbr.rel (%p314) target = $region40
    $region39: #{conv_bn_2d.3} parent=5 // pred_region
      %s317 = ssub.s32 %s9, 2
      // Predicated region
      $region41: #{conv_bn_2d.3} parent=39 // pred_check
        %p318 = pneg %p143
      $region42: #{conv_bn_2d.3} parent=39 // pred_check_branch
        %320 = sbr.rel (%p318) target = $region44
      $region43: #{conv_bn_2d.3} parent=39 // pred_region
        %s321 = smul.u32 2, %s23
        %p322 = scmp.lt.s32.totalorder %s22, 1
        %s323 = scalar_select %p322, %s22, 1
        %p324 = scmp.lt.s32.totalorder %s24, 0
        %s325 = scalar_select %p324, %s24, 0
        %p326 = scmp.lt.s32.totalorder %s321, 1
        %s327 = scalar_select %p326, %s321, 1
        %s328 = smul.addr %s325, 2
        %s329 = sadd.s32 %s327, %s328
        %s330 = smul.addr %s323, 2
        %s331 = sadd.s32 %s329, %s330
        %s332 = smul.addr %s331, 8
        %s333 = scalar_lea.vmem %s3, %s332
      $region44: #{conv_bn_2d.3} parent=39 // pred_fallthru
        _
    $region40: #{conv_bn_2d.3} parent=5 // pred_fallthru
      _
  $region6: #{conv_bn_2d.3} parent=0 // loop_footer
    %s13 = sadd.s32 1, %s9
  $region7: #{conv_bn_2d.3} parent=0 // loop_footer_branch
    %8 = sbr.rel target = $region3
  $region8: #{conv_bn_2d.3} parent=0 // loop_exit
    _

// kernel: conv_bn_2d.2
$region0: #{conv_bn_2d.2}
  #allocation0 [shape = 'u32[]', space=smem, size = 0x4, offset = 0x4, fixed_abs, tag = 'smem constant byte address 0x4 - core index']
  #allocation1 [shape = 'u32[144,128]{1,0:T(1,128)}', space=vmem, size = 0x12000, scoped, tag = 'internal scratch']
  %s0 = inlined_call_operand.vmem [shape: bf16[2,48,256], index: 0, kind: input, shape index: {}]
  %s1 = inlined_call_operand.vmem [shape: bf16[8,48], index: 1, kind: input, shape index: {}]
  %s2 = inlined_call_operand.vmem [shape: bf16[2,8,256], index: 2, kind: output, shape index: {0}]
  %s3 = inlined_call_operand.vmem [shape: f32[2,1,2,8], index: 3, kind: output, shape index: {1}]
  %4 = xla_tuple %s2, %s3
  %s5 = sld [smem:[#allocation0]]
  $region49: #{conv_bn_2d.2} parent=0
    _
  %s7 = ssub.s32 1, %s5
  %s8 = scalar_select 0, %s7, %s5
  loop: start=0, step=1, limit=4
  $region2: #{conv_bn_2d.2} parent=0 // loop_pre_header
    _
  $region3: #{conv_bn_2d.2} parent=0 // loop_header
    %s10 = sphi 0, %s14
    %p11 = scmp.ge.s32.totalorder %s10, 4
    %s17 = sphi 0, %s36
    %s18 = sphi 0, %s32
    %s19 = sphi 0, %s28
    %s20 = sphi 0, %s17
    %s21 = sphi 0, %s18
    %s22 = sphi 0, %s19
    %s23 = sphi 0, %s20
    %s24 = sphi 0, %s21
    %s25 = sphi 0, %s22
    %s41 = sphi 0, %s43
    %s44 = sphi 0, %s41
    %s45 = sphi 0, %s44
    %s61 = sphi 0, %s45
    %s67 = sphi 0, %s69
    %s70 = sphi 0, %s67
    %s71 = sphi 0, %s70
    %s87 = sphi 0, %s71
    %s97 = sphi 0, %s99
    %s100 = sphi 0, %s97
    %s101 = sphi 0, %s100
    %s117 = sphi 0, %s101
    %s127 = sphi 0, %s129
    %s130 = sphi 0, %s127
    %s131 = sphi 0, %s130
    %s147 = sphi 0, %s131
  $region4: #{conv_bn_2d.2} parent=0 // loop_header_branch
    %13 = sbr.rel (%p11) target = $region8
  $region5: #{conv_bn_2d.2} parent=0 // loop_body
    %s15 = ssub.s32 %s10, 1
    %s16 = ssub.s32 %s10, 2
    %s26 = sadd.s32 1, %s19
    %p27 = scmp.ge.s32.totalorder %s26, 1
    %s28 = scalar_select %p27, 0, %s26
    %s29 = sadd.s32 1, %s18
    %s30 = scalar_select %p27, %s29, %s18
    %p31 = scmp.ge.s32.totalorder %s30, 1
    %s32 = scalar_select %p31, 0, %s30
    %s33 = sadd.s32 1, %s17
    %s34 = scalar_select %p31, %s33, %s17
    %p35 = scmp.ge.s32.totalorder %s34, 2
    %s36 = scalar_select %p35, 0, %s34
    %s37 = ssub.s32 %s17, %s36
    %s38 = ssub.s32 %s18, %s32
    %s39 = sor.u32 %s37, %s38
    %p40 = scmp.eq.s32.totalorder %s39, 0
    %s42 = sadd.s32 %s41, 1
    %s43 = scalar_select %p40, %s41, %s42
    %p46 = pneg %p40
    %p47 = scmp.eq.s32.totalorder %s10, 1
    %p48 = por %p46, %p47
    %p49 = scmp.ne.s32.totalorder %s41, %s44
    %p50 = scmp.eq.s32.totalorder %s10, 0
    %p51 = por %p49, %p50
    %p52 = scmp.ne.s32.totalorder %s41, %s44
    %p53 = scmp.eq.s32.totalorder %s15, 1
    %p54 = por %p52, %p53
    %p55 = scmp.ne.s32.totalorder %s44, %s45
    %p56 = scmp.eq.s32.totalorder %s15, 0
    %p57 = por %p55, %p56
    %p58 = scmp.ne.s32.totalorder %s44, %s45
    %p59 = scmp.eq.s32.totalorder %s16, 1
    %p60 = por %p58, %p59
    %p62 = scmp.ne.s32.totalorder %s45, %s61
    %p63 = scmp.eq.s32.totalorder %s16, 0
    %p64 = por %p62, %p63
    %s65 = ssub.s32 %s19, %s28
    %p66 = scmp.eq.s32.totalorder %s65, 0
    %s68 = sadd.s32 %s67, 1
    %s69 = scalar_select %p66, %s67, %s68
    %p72 = pneg %p66
    %p73 = scmp.eq.s32.totalorder %s10, 1
    %p74 = por %p72, %p73
    %p75 = scmp.ne.s32.totalorder %s67, %s70
    %p76 = scmp.eq.s32.totalorder %s10, 0
    %p77 = por %p75, %p76
    %p78 = scmp.ne.s32.totalorder %s67, %s70
    %p79 = scmp.eq.s32.totalorder %s15, 1
    %p80 = por %p78, %p79
    %p81 = scmp.ne.s32.totalorder %s70, %s71
    %p82 = scmp.eq.s32.totalorder %s15, 0
    %p83 = por %p81, %p82
    %p84 = scmp.ne.s32.totalorder %s70, %s71
    %p85 = scmp.eq.s32.totalorder %s16, 1
    %p86 = por %p84, %p85
    %p88 = scmp.ne.s32.totalorder %s71, %s87
    %p89 = scmp.eq.s32.totalorder %s16, 0
    %p90 = por %p88, %p89
    %s91 = ssub.s32 %s17, %s36
    %s92 = ssub.s32 %s19, %s28
    %s93 = sor.u32 %s91, %s92
    %s94 = ssub.s32 %s18, %s32
    %s95 = sor.u32 %s93, %s94
    %p96 = scmp.eq.s32.totalorder %s95, 0
    %s98 = sadd.s32 %s97, 1
    %s99 = scalar_select %p96, %s97, %s98
    %p102 = pneg %p96
    %p103 = scmp.eq.s32.totalorder %s10, 1
    %p104 = por %p102, %p103
    %p105 = scmp.ne.s32.totalorder %s97, %s100
    %p106 = scmp.eq.s32.totalorder %s10, 0
    %p107 = por %p105, %p106
    %p108 = scmp.ne.s32.totalorder %s97, %s100
    %p109 = scmp.eq.s32.totalorder %s15, 1
    %p110 = por %p108, %p109
    %p111 = scmp.ne.s32.totalorder %s100, %s101
    %p112 = scmp.eq.s32.totalorder %s15, 0
    %p113 = por %p111, %p112
    %p114 = scmp.ne.s32.totalorder %s100, %s101
    %p115 = scmp.eq.s32.totalorder %s16, 1
    %p116 = por %p114, %p115
    %p118 = scmp.ne.s32.totalorder %s101, %s117
    %p119 = scmp.eq.s32.totalorder %s16, 0
    %p120 = por %p118, %p119
    %s121 = ssub.s32 %s17, %s36
    %s122 = ssub.s32 %s18, %s32
    %s123 = sor.u32 %s121, %s122
    %s124 = ssub.s32 %s19, %s28
    %s125 = sor.u32 %s123, %s124
    %p126 = scmp.eq.s32.totalorder %s125, 0
    %s128 = sadd.s32 %s127, 1
    %s129 = scalar_select %p126, %s127, %s128
    %p132 = pneg %p126
    %p133 = scmp.eq.s32.totalorder %s10, 1
    %p134 = por %p132, %p133
    %p135 = scmp.ne.s32.totalorder %s127, %s130
    %p136 = scmp.eq.s32.totalorder %s10, 0
    %p137 = por %p135, %p136
    %p138 = scmp.ne.s32.totalorder %s127, %s130
    %p139 = scmp.eq.s32.totalorder %s15, 1
    %p140 = por %p138, %p139
    %p141 = scmp.ne.s32.totalorder %s130, %s131
    %p142 = scmp.eq.s32.totalorder %s15, 0
    %p143 = por %p141, %p142
    %p144 = scmp.ne.s32.totalorder %s130, %s131
    %p145 = scmp.eq.s32.totalorder %s16, 1
    %p146 = por %p144, %p145
    %p148 = scmp.ne.s32.totalorder %s131, %s147
    %p149 = scmp.eq.s32.totalorder %s16, 0
    %p150 = por %p148, %p149
    %p151 = scmp.le.s32.totalorder 1, %s10
    %p152 = scmp.lt.s32.totalorder %s10, 3
    %p153 = pnand %p151, %p152
    %p154 = pneg %p153
    // Predicated region
    $region9: #{conv_bn_2d.2} parent=5 // pred_check
      _
    $region10: #{conv_bn_2d.2} parent=5 // pred_check_branch
      %156 = sbr.rel (%p153) target = $region12
    $region11: #{conv_bn_2d.2} parent=5 // pred_region
      %s157 = ssub.s32 %s10, 1
      // Predicated region
      $region13: #{conv_bn_2d.2} parent=11 // pred_check
        %p158 = pneg %p83
      $region14: #{conv_bn_2d.2} parent=11 // pred_check_branch
        %160 = sbr.rel (%p158) target = $region16
      $region15: #{conv_bn_2d.2} parent=11 // pred_region
        %p161 = scmp.lt.s32.totalorder %s22, 0
        %s162 = scalar_select %p161, %s22, 0
        %s163 = smul.addr %s162, 4
        %s164 = scalar_lea.vmem %s1, %s163
      $region16: #{conv_bn_2d.2} parent=11 // pred_fallthru
        _
    $region12: #{conv_bn_2d.2} parent=5 // pred_fallthru
      _
    %p165 = scmp.lt.s32.totalorder %s10, 2
    // Predicated region
    $region17: #{conv_bn_2d.2} parent=5 // pred_check
      %p166 = pneg %p165
    $region18: #{conv_bn_2d.2} parent=5 // pred_check_branch
      %168 = sbr.rel (%p166) target = $region20
    $region19: #{conv_bn_2d.2} parent=5 // pred_region
      // Predicated region
      $region21: #{conv_bn_2d.2} parent=19 // pred_check
        %p169 = pneg %p51
      $region22: #{conv_bn_2d.2} parent=19 // pred_check_branch
        %171 = sbr.rel (%p169) target = $region24
      $region23: #{conv_bn_2d.2} parent=19 // pred_region
        %s172 = smul.u32 2, %s18
        %p173 = scmp.lt.s32.totalorder %s17, 1
        %s174 = scalar_select %p173, %s17, 1
        %p175 = scmp.lt.s32.totalorder %s172, 1
        %s176 = scalar_select %p175, %s172, 1
        %s177 = smul.addr %s174, 12
        %s178 = sadd.s32 %s176, %s177
        %s179 = smul.addr %s178, 4
        %s180 = scalar_lea.vmem %s0, %s179
        %s181 = smul.u32 2, %s18
      $region24: #{conv_bn_2d.2} parent=19 // pred_fallthru
        _
    $region20: #{conv_bn_2d.2} parent=5 // pred_fallthru
      _
    %p182 = scmp.le.s32.totalorder 1, %s10
    %p183 = scmp.lt.s32.totalorder %s10, 3
    %p184 = pnand %p182, %p183
    %p185 = pneg %p184
    // Predicated region
    $region25: #{conv_bn_2d.2} parent=5 // pred_check
      _
    $region26: #{conv_bn_2d.2} parent=5 // pred_check_branch
      %187 = sbr.rel (%p184) target = $region28
    $region27: #{conv_bn_2d.2} parent=5 // pred_region
      %s188 = ssub.s32 %s10, 1
      %s189 = smul.u32 2, %s21
      %p190 = scmp.lt.s32.totalorder %s20, 1
      %s191 = scalar_select %p190, %s20, 1
      %p192 = scmp.lt.s32.totalorder %s189, 1
      %s193 = scalar_select %p192, %s189, 1
      %s194 = smul.addr %s191, 12
      %s195 = sadd.s32 %s193, %s194
      %s196 = smul.addr %s195, 4
      %s197 = scalar_lea.vmem %s0, %s196
      %p198 = pneg %p57
      %p199 = pneg %p54
      %p200 = scmp.lt.s32.totalorder %s22, 0
      %s201 = scalar_select %p200, %s22, 0
      %s202 = smul.addr %s201, 4
      %s203 = scalar_lea.vmem %s1, %s202
      %p204 = pneg %p83
      %p205 = pneg %p80
      %p206 = pneg %p113
      %p207 = pneg %p110
      %s208 = smul.u32 2, %s21
      %p209 = scmp.lt.s32.totalorder %s20, 1
      %s210 = scalar_select %p209, %s20, 1
      %p211 = scmp.lt.s32.totalorder %s22, 0
      %s212 = scalar_select %p211, %s22, 0
      %p213 = scmp.lt.s32.totalorder %s208, 1
      %s214 = scalar_select %p213, %s208, 1
      %s215 = smul.addr %s212, 2
      %s216 = sadd.s32 %s214, %s215
      %s217 = smul.addr %s210, 2
      %s218 = sadd.s32 %s216, %s217
      %s219 = smul.addr %s218, 4
      %s220 = scalar_lea.vmem %s2, %s219
      %p221 = pneg %p143
      %p222 = pneg %p140
      %p223 = scmp.lt.s32.totalorder %s20, 1
      %s224 = scalar_select %p223, %s20, 1
      %p225 = scmp.lt.s32.totalorder %s21, 0
      %s226 = scalar_select %p225, %s21, 0
      %p227 = scmp.lt.s32.totalorder %s22, 0
      %s228 = scalar_select %p227, %s22, 0
      %s229 = sadd.s32 %s228, %s226
      %s230 = sadd.s32 %s229, %s224
      %s231 = smul.addr %s230, 2
      %s232 = scalar_lea.vmem %s3, %s231
      %s233 = smul.u32 2, %s21
      %p234 = scmp.lt.s32.totalorder %s20, 1
      %s235 = scalar_select %p234, %s20, 1
      %p236 = scmp.lt.s32.totalorder %s233, 1
      %s237 = scalar_select %p236, %s233, 1
      %s238 = smul.addr %s235, 12
      %s239 = sadd.s32 %s237, %s238
      %s240 = smul.addr %s239, 4
      %s241 = scalar_lea.vmem %s0, %s240
      %s242 = smul.u32 2, %s21
      %p243 = scmp.lt.s32.totalorder %s22, 0
      %s244 = scalar_select %p243, %s22, 0
      %s245 = smul.addr %s244, 4
      %s246 = scalar_lea.vmem %s1, %s245
      %s247 = smul.u32 2, %s21
      %p248 = scmp.lt.s32.totalorder %s20, 1
      %s249 = scalar_select %p248, %s20, 1
      %p250 = scmp.lt.s32.totalorder %s22, 0
      %s251 = scalar_select %p250, %s22, 0
      %p252 = scmp.lt.s32.totalorder %s247, 1
      %s253 = scalar_select %p252, %s247, 1
      %s254 = smul.addr %s251, 2
      %s255 = sadd.s32 %s253, %s254
      %s256 = smul.addr %s249, 2
      %s257 = sadd.s32 %s255, %s256
      %s258 = smul.addr %s257, 4
      %s259 = scalar_lea.vmem %s2, %s258
      %s260 = smul.u32 2, %s21
      %p261 = scmp.lt.s32.totalorder %s20, 1
      %s262 = scalar_select %p261, %s20, 1
      %p263 = scmp.lt.s32.totalorder %s21, 0
      %s264 = scalar_select %p263, %s21, 0
      %p265 = scmp.lt.s32.totalorder %s22, 0
      %s266 = scalar_select %p265, %s22, 0
      %s267 = sadd.s32 %s266, %s264
      %s268 = sadd.s32 %s267, %s262
      %s269 = smul.addr %s268, 2
      %s270 = scalar_lea.vmem %s3, %s269
      %v272 = vld [vmem:[%s246] sm:$0xf]
      %v273 = vld [vmem:[%s241] sm:$0xff]
      %v274 = vld [vmem:[%s241 + $0x8] sm:$0xff]
      %v275 = vld [vmem:[%s241 + $0x10] sm:$0xff]
      %v276 = vld [vmem:[%s241 + $0x18] sm:$0xff]
      %v277 = vld [vmem:[%s241 + $0x20] sm:$0xff]
      %v278 = vld [vmem:[%s241 + $0x28] sm:$0xff]
      %v285 = vunpack.c.l.b16 %v273
      %v286 = vunpack.c.h.b16 %v273
      %v287 = vunpack.c.l.b16 %v274
      %v288 = vunpack.c.h.b16 %v274
      %v289 = vunpack.c.l.b16 %v275
      %v290 = vunpack.c.h.b16 %v275
      %v291 = vunpack.c.l.b16 %v276
      %v292 = vunpack.c.h.b16 %v276
      %v293 = vunpack.c.l.b16 %v277
      %v294 = vunpack.c.h.b16 %v277
      %v295 = vunpack.c.l.b16 %v278
      %v296 = vunpack.c.h.b16 %v278
      %v297 = vpack.c.b16 %v287, %v285
      %v298 = vpack.c.b16 %v288, %v286
      %v299 = vpack.c.b16 %v291, %v289
      %v300 = vpack.c.b16 %v292, %v290
      %v301 = vpack.c.b16 %v295, %v293
      %v302 = vpack.c.b16 %v296, %v294
      %vm309 = vcmask 392192
      %v311 = vsel %vm309, %v272, 0
      %313 = vmatprep.subr.bf16.mxu0 %v298
      %314 = vmatpush1.bf16.msra.mxu0 %v297
      %315 = vmatprep.subr.bf16.mxu0 %v300
      %316 = vmatpush1.bf16.msra.mxu0 %v299
      %317 = vmatprep.subr.bf16.mxu0 %v302
      %318 = vmatpush1.bf16.msra.mxu0 %v301
      %319 = vmatprep.subr.bf16.mxu0 0
      %320 = vmatpush1.bf16.msra.mxu0 0
      %321 = vmatprep.subr.bf16.mxu0 0
      %322 = vmatpush1.bf16.msra.mxu0 0
      %323 = vmatprep.subr.bf16.mxu0 0
      %324 = vmatpush1.bf16.msra.mxu0 0
      %325 = vmatprep.subr.bf16.mxu0 0
      %326 = vmatpush1.bf16.msra.mxu0 0
      %327 = vmatprep.subr.bf16.mxu0 0
      %328 = vmatpush1.bf16.msra.mxu0 0
      %329 = vmatprep.subr.bf16.mxu0 0
      %330 = vmatpush1.bf16.msra.mxu0 0
      %331 = vmatprep.subr.bf16.mxu0 0
      %332 = vmatpush1.bf16.msra.mxu0 0
      %333 = vmatprep.subr.bf16.mxu0 0
      %334 = vmatpush1.bf16.msra.mxu0 0
      %335 = vmatprep.subr.bf16.mxu0 0
      %336 = vmatpush1.bf16.msra.mxu0 0
      %337 = vmatprep.subr.bf16.mxu0 0
      %338 = vmatpush1.bf16.msra.mxu0 0
      %339 = vmatprep.subr.bf16.mxu0 0
      %340 = vmatpush1.bf16.msra.mxu0 0
      %341 = vmatprep.subr.bf16.mxu0 0
      %342 = vmatpush1.bf16.msra.mxu0 0
      %343 = vmatprep.subr.bf16.mxu0 0
      %344 = vmatpush1.bf16.msra.mxu0 0
      %345 = vmatprep.mubr.bf16.mxu0 0
      %346 = vmatmul.mubr.bf16.gmra.mrb[0].mxu0 %v311
      %v347 = vpop.f32.mrb[0].mxu0
      %v348 = vadd.f32 0.0, %v347
      %v349 = vpop.f32.mrb[0].mxu0
      %v350 = vadd.f32 0.0, %v349
      %v351 = vpop.f32.mrb[0].mxu0
      %v352 = vpop.f32.mrb[0].mxu0
      %353 = vdwg.mxu0
      %v354 = vpack.c.bf16 %v348, %v348
      %v355 = vpack.c.bf16 %v350, %v350
      %v358 = vunpack.c.l.b16 %v354
      %v359 = vunpack.c.l.b16 %v355
      %v360 = vpack.c.b16 %v359, %v358
      %362 = vst [vmem:[%s259] sm:$0xff] %v360
      %v363 = vadd.f32 %v348, %v350
      %364 = vadd.xlane.f32.xlu0 %v363
      %v365 = vpop.xlane.xlu0 %364
      %v366 = vmul.f32 %v348, %v348
      %v367 = vmul.f32 %v350, %v350
      %v368 = vadd.f32 %v366, %v367
      %369 = vadd.xlane.f32.xlu0 %v368
      %v370 = vpop.xlane.xlu0 %369
      %v372 = vlaneseq
      %v373 = vand.u32 %v372, 127
      %v374 = vlaneseq
      %v375 = vshrl.u32 %v374, 7
      %v376 = vsub.s32 %v373, %v375
      %v377 = vrot.slane %v365, %v376
      %v380 = vlaneseq
      %v381 = vshrl.u32 %v380, 7
      %v382 = vsub.s32 %v373, %v381
      %v383 = vrot.slane %v370, %v382
      %vm385 = vcmask 1040384
      %v386 = vsel %vm385, %v377, %v383
      %vm387 = vcmask 58368
      %388 = vst.msk [vmem:[%s270] sm:$0x3] %vm387, %v386
      %s389 = smul.u32 2, %s21
      %p390 = scmp.lt.s32.totalorder %s20, 1
      %s391 = scalar_select %p390, %s20, 1
      %p392 = scmp.lt.s32.totalorder %s22, 0
      %s393 = scalar_select %p392, %s22, 0
      %p394 = scmp.lt.s32.totalorder %s389, 1
      %s395 = scalar_select %p394, %s389, 1
      %s396 = smul.addr %s393, 2
      %s397 = sadd.s32 %s395, %s396
      %s398 = smul.addr %s391, 2
      %s399 = sadd.s32 %s397, %s398
      %s400 = smul.addr %s399, 4
      %s401 = scalar_lea.vmem %s2, %s400
      %p402 = scmp.lt.s32.totalorder %s20, 1
      %s403 = scalar_select %p402, %s20, 1
      %p404 = scmp.lt.s32.totalorder %s21, 0
      %s405 = scalar_select %p404, %s21, 0
      %p406 = scmp.lt.s32.totalorder %s22, 0
      %s407 = scalar_select %p406, %s22, 0
      %s408 = sadd.s32 %s407, %s405
      %s409 = sadd.s32 %s408, %s403
      %s410 = smul.addr %s409, 2
      %s411 = scalar_lea.vmem %s3, %s410
      // Predicated region
      $region29: #{conv_bn_2d.2} parent=27 // pred_check
        %p412 = pneg %p110
      $region30: #{conv_bn_2d.2} parent=27 // pred_check_branch
        %414 = sbr.rel (%p412) target = $region32
      $region31: #{conv_bn_2d.2} parent=27 // pred_region
        %s415 = smul.u32 2, %s21
      $region32: #{conv_bn_2d.2} parent=27 // pred_fallthru
        _
      // Predicated region
      $region33: #{conv_bn_2d.2} parent=27 // pred_check
        %p416 = pneg %p140
      $region34: #{conv_bn_2d.2} parent=27 // pred_check_branch
        %418 = sbr.rel (%p416) target = $region36
      $region35: #{conv_bn_2d.2} parent=27 // pred_region
        _
      $region36: #{conv_bn_2d.2} parent=27 // pred_fallthru
        _
    $region28: #{conv_bn_2d.2} parent=5 // pred_fallthru
      _
    %p419 = scmp.le.s32.totalorder 2, %s10
    // Predicated region
    $region37: #{conv_bn_2d.2} parent=5 // pred_check
      %p420 = pneg %p419
    $region38: #{conv_bn_2d.2} parent=5 // pred_check_branch
      %422 = sbr.rel (%p420) target = $region40
    $region39: #{conv_bn_2d.2} parent=5 // pred_region
      %s423 = ssub.s32 %s10, 2
      // Predicated region
      $region41: #{conv_bn_2d.2} parent=39 // pred_check
        %p424 = pneg %p116
      $region42: #{conv_bn_2d.2} parent=39 // pred_check_branch
        %426 = sbr.rel (%p424) target = $region44
      $region43: #{conv_bn_2d.2} parent=39 // pred_region
        %s427 = smul.u32 2, %s24
        %p428 = scmp.lt.s32.totalorder %s23, 1
        %s429 = scalar_select %p428, %s23, 1
        %p430 = scmp.lt.s32.totalorder %s25, 0
        %s431 = scalar_select %p430, %s25, 0
        %p432 = scmp.lt.s32.totalorder %s427, 1
        %s433 = scalar_select %p432, %s427, 1
        %s434 = smul.addr %s431, 2
        %s435 = sadd.s32 %s433, %s434
        %s436 = smul.addr %s429, 2
        %s437 = sadd.s32 %s435, %s436
        %s438 = smul.addr %s437, 4
        %s439 = scalar_lea.vmem %s2, %s438
      $region44: #{conv_bn_2d.2} parent=39 // pred_fallthru
        _
      // Predicated region
      $region45: #{conv_bn_2d.2} parent=39 // pred_check
        %p440 = pneg %p146
      $region46: #{conv_bn_2d.2} parent=39 // pred_check_branch
        %442 = sbr.rel (%p440) target = $region48
      $region47: #{conv_bn_2d.2} parent=39 // pred_region
        %p443 = scmp.lt.s32.totalorder %s23, 1
        %s444 = scalar_select %p443, %s23, 1
        %p445 = scmp.lt.s32.totalorder %s24, 0
        %s446 = scalar_select %p445, %s24, 0
        %p447 = scmp.lt.s32.totalorder %s25, 0
        %s448 = scalar_select %p447, %s25, 0
        %s449 = sadd.s32 %s448, %s446
        %s450 = sadd.s32 %s449, %s444
        %s451 = smul.addr %s450, 2
        %s452 = scalar_lea.vmem %s3, %s451
      $region48: #{conv_bn_2d.2} parent=39 // pred_fallthru
        _
    $region40: #{conv_bn_2d.2} parent=5 // pred_fallthru
      _
  $region6: #{conv_bn_2d.2} parent=0 // loop_footer
    %s14 = sadd.s32 1, %s10
  $region7: #{conv_bn_2d.2} parent=0 // loop_footer_branch
    %9 = sbr.rel target = $region3
  $region8: #{conv_bn_2d.2} parent=0 // loop_exit
    _

</llo_original>
